<compile_context>
chip_gen: v7x
topology: tpu7x:2x2x1
jax: 0.10.0
libtpu: 0.0.40
codegen_flags: <defaults>
</compile_context>

<pallas_src>
import functools

import jax
import jax.numpy as jnp
from jax.experimental import pallas as pl
from jax.experimental.pallas import tpu as pltpu


def _qnet_kernel(x_ref, w1_ref, b1_ref, w2_ref, b2_ref, out_ref):
    # x:  (TB, D_in)     w1: (D_in, H_pad)   b1: (1, H_pad)
    # w2: (H_pad, O_pad) b2: (1, O_pad)      out: (TB, O_pad)
    x = x_ref[...]
    # First layer: MXU matmul with f32 accumulation, bias + ReLU on the VPU in f32.
    h = jnp.dot(x, w1_ref[...], preferred_element_type=jnp.float32) + b1_ref[...]
    h = jnp.maximum(h, 0.0)
    # Second layer: cast the f32 activation back to weight dtype (bf16 MXU path if
    # weights are bf16; no-op for f32), accumulate in f32.
    y = jnp.dot(h.astype(w2_ref.dtype), w2_ref[...],
                preferred_element_type=jnp.float32) + b2_ref[...]
    out_ref[...] = y.astype(out_ref.dtype)


def _round_up(n, m):
    return ((n + m - 1) // m) * m


@functools.partial(jax.jit, static_argnames=("block_b",))
def linear_qnet_forward(x, w1, b1, w2, b2, *, block_b=1024):
    """Fused forward: relu(x @ w1 + b1) @ w2 + b2.

    x:  (B, D_in)
    w1: (D_in, H), b1: (H,) or (1, H)
    w2: (H, D_out), b2: (D_out,) or (1, D_out)
    Returns (B, D_out) in x.dtype (note: bf16 x => bf16 output, truncating the
    f32 accumulator — intentional).
    """
    B, D_in = x.shape
    H = w1.shape[1]
    D_out = w2.shape[1]

    # Lane-dense padding of the feature dims (128-lane vregs).
    H_pad = _round_up(H, 128)
    O_pad = _round_up(D_out, 128)
    w1p = jnp.pad(w1, ((0, 0), (0, H_pad - H)))
    b1p = jnp.pad(b1.reshape(1, -1), ((0, 0), (0, H_pad - H)))
    w2p = jnp.pad(w2, ((0, H_pad - H), (0, O_pad - D_out)))
    b2p = jnp.pad(b2.reshape(1, -1), ((0, 0), (0, O_pad - D_out)))

    # Batch tiling: tile is a multiple of 8 sublanes, capped at block_b.
    # (At block_b=1024 the double-buffered tiles are well under the scoped VMEM
    # default on all of v5e/v6e/v7x; raise vmem_limit_bytes if block_b is pushed
    # much higher.)
    TB = min(block_b, _round_up(B, 8))
    B_pad = _round_up(B, TB)
    xp = jnp.pad(x, ((0, B_pad - B), (0, 0))) if B_pad != B else x

    grid = (B_pad // TB,)
    out = pl.pallas_call(
        _qnet_kernel,
        out_shape=jax.ShapeDtypeStruct((B_pad, O_pad), x.dtype),
        grid=grid,
        in_specs=[
            pl.BlockSpec((TB, D_in), lambda i: (i, 0)),       # batch-tiled input
            pl.BlockSpec((D_in, H_pad), lambda i: (0, 0)),    # resident weights
            pl.BlockSpec((1, H_pad), lambda i: (0, 0)),
            pl.BlockSpec((H_pad, O_pad), lambda i: (0, 0)),
            pl.BlockSpec((1, O_pad), lambda i: (0, 0)),
        ],
        out_specs=pl.BlockSpec((TB, O_pad), lambda i: (i, 0)),
        compiler_params=pltpu.CompilerParams(
            dimension_semantics=("parallel",),                # megacore on v7x
        ),
    )(xp, w1p, b1p, w2p, b2p)

    # Slice logical batch / output columns back out (padding is exact zeros).
    return out[:B, :D_out]


def init_params(key, input_size, hidden_size, output_size, dtype=jnp.float32):
    # Deterministic init mimicking torch.nn.Linear: U(-1/sqrt(fan_in), 1/sqrt(fan_in)).
    k1, k2, k3, k4 = jax.random.split(key, 4)
    lim1 = 1.0 / (input_size ** 0.5)
    lim2 = 1.0 / (hidden_size ** 0.5)
    w1 = jax.random.uniform(k1, (input_size, hidden_size), dtype, -lim1, lim1)
    b1 = jax.random.uniform(k2, (1, hidden_size), dtype, -lim1, lim1)
    w2 = jax.random.uniform(k3, (hidden_size, output_size), dtype, -lim2, lim2)
    b2 = jax.random.uniform(k4, (1, output_size), dtype, -lim2, lim2)
    return w1, b1, w2, b2


# TODO(synk): Linear_QNet.save() (torch checkpoint I/O) is host-side and has no
# kernel equivalent.

if __name__ == "__main__":
    key = jax.random.PRNGKey(0)
    kx, kp = jax.random.split(key)

    # Small shapes consistent with the module (snake-game Q-net).
    batch, input_size, hidden_size, output_size = 8, 16, 32, 8

    x = jax.random.normal(kx, (batch, input_size), jnp.float32)
    w1, b1, w2, b2 = init_params(kp, input_size, hidden_size, output_size)

    # f32 path, strict correctness check against a pure-JAX reference.
    out = jax.block_until_ready(linear_qnet_forward(x, w1, b1, w2, b2))
    ref = jnp.maximum(x @ w1 + b1, 0.0) @ w2 + b2
    assert out.shape == (batch, output_size)
    assert jnp.allclose(out, ref, atol=1e-5, rtol=1e-5)

    # bf16 MXU-native path (f32 accumulation in-kernel), loose-tolerance smoke check.
    xb = x.astype(jnp.bfloat16)
    w1b, b1b, w2b, b2b = (p.astype(jnp.bfloat16) for p in (w1, b1, w2, b2))
    out_bf16 = jax.block_until_ready(linear_qnet_forward(xb, w1b, b1b, w2b, b2b))
    assert out_bf16.shape == (batch, output_size)
    assert jnp.allclose(out_bf16.astype(jnp.float32), ref, atol=5e-2, rtol=5e-2)

    print("KERNEL_OK")
</pallas_src>

<mosaic_0001>
module attributes {stable_mosaic.version = 11 : i64} {
  func.func @_qnet_kernel(%arg0: i32, %arg1: memref<8x16xf32, #tpu.memory_space<vmem>>, %arg2: memref<16x128xf32, #tpu.memory_space<vmem>>, %arg3: memref<1x128xf32, #tpu.memory_space<vmem>>, %arg4: memref<128x128xf32, #tpu.memory_space<vmem>>, %arg5: memref<1x128xf32, #tpu.memory_space<vmem>>, %arg6: memref<8x128xf32, #tpu.memory_space<vmem>>) attributes {dimension_semantics = [#tpu.dimension_semantics<parallel>], iteration_bounds = array<i64: 1>, scalar_prefetch = 0 : i64, scratch_operands = 0 : i64, tpu.core_type = #tpu.core_type<tc>, window_params = [{transform_indices = @transform_0, window_bounds = array<i64: 8, 16>}, {pipeline_mode = #tpu.pipeline_mode<synchronous>, transform_indices = @transform_1, window_bounds = array<i64: 16, 128>}, {pipeline_mode = #tpu.pipeline_mode<synchronous>, transform_indices = @transform_2, window_bounds = array<i64: 1, 128>}, {pipeline_mode = #tpu.pipeline_mode<synchronous>, transform_indices = @transform_3, window_bounds = array<i64: 128, 128>}, {pipeline_mode = #tpu.pipeline_mode<synchronous>, transform_indices = @transform_4, window_bounds = array<i64: 1, 128>}, {transform_indices = @transform_5, window_bounds = array<i64: 8, 128>}]} {
    %c0 = arith.constant 0 : index
    %c0_0 = arith.constant 0 : index
    %0 = vector.load %arg1[%c0, %c0_0] : memref<8x16xf32, #tpu.memory_space<vmem>>, vector<8x16xf32>
    %c0_1 = arith.constant 0 : index
    %c0_2 = arith.constant 0 : index
    %1 = vector.load %arg2[%c0_1, %c0_2] : memref<16x128xf32, #tpu.memory_space<vmem>>, vector<16x128xf32>
    %cst = arith.constant dense<0.000000e+00> : vector<8x128xf32>
    %2 = tpu.matmul %0, %1, %cst {dimension_numbers = #tpu.dot_dimension_numbers<[1], [0], [0], [1], [0, 0, 1, 1], [], []>} : vector<8x16xf32>, vector<16x128xf32>, vector<8x128xf32> -> vector<8x128xf32>
    %c0_3 = arith.constant 0 : index
    %c0_4 = arith.constant 0 : index
    %3 = vector.load %arg3[%c0_3, %c0_4] : memref<1x128xf32, #tpu.memory_space<vmem>>, vector<1x128xf32>
    %4 = vector.broadcast %3 : vector<1x128xf32> to vector<8x128xf32>
    %5 = arith.addf %2, %4 : vector<8x128xf32>
    %cst_5 = arith.constant 0.000000e+00 : f32
    %6 = vector.broadcast %cst_5 : f32 to vector<8x128xf32>
    %7 = arith.maximumf %5, %6 : vector<8x128xf32>
    %c0_6 = arith.constant 0 : index
    %c0_7 = arith.constant 0 : index
    %8 = vector.load %arg4[%c0_6, %c0_7] : memref<128x128xf32, #tpu.memory_space<vmem>>, vector<128x128xf32>
    %cst_8 = arith.constant dense<0.000000e+00> : vector<8x128xf32>
    %9 = tpu.matmul %7, %8, %cst_8 {dimension_numbers = #tpu.dot_dimension_numbers<[1], [0], [0], [1], [0, 0, 1, 1], [], []>} : vector<8x128xf32>, vector<128x128xf32>, vector<8x128xf32> -> vector<8x128xf32>
    %c0_9 = arith.constant 0 : index
    %c0_10 = arith.constant 0 : index
    %10 = vector.load %arg5[%c0_9, %c0_10] : memref<1x128xf32, #tpu.memory_space<vmem>>, vector<1x128xf32>
    %11 = vector.broadcast %10 : vector<1x128xf32> to vector<8x128xf32>
    %12 = arith.addf %9, %11 : vector<8x128xf32>
    %c0_11 = arith.constant 0 : index
    %c0_12 = arith.constant 0 : index
    %13 = vector.load %arg6[%c0_11, %c0_12] : memref<8x128xf32, #tpu.memory_space<vmem>>, vector<8x128xf32>
    tpu.vector_store %arg6[%c0_11, %c0_12], %12 {strides = array<i32>} : memref<8x128xf32, #tpu.memory_space<vmem>>, vector<8x128xf32>,
    return
  }
  func.func @transform_0(%arg0: i32) -> (i32, i32) {
    %c0_i32 = arith.constant 0 : i32
    %c0_i32_0 = arith.constant 0 : i32
    return %arg0, %c0_i32 : i32, i32
  }
  func.func @transform_1(%arg0: i32) -> (i32, i32) {
    %c0_i32 = arith.constant 0 : i32
    %c0_i32_0 = arith.constant 0 : i32
    %c0_i32_1 = arith.constant 0 : i32
    return %c0_i32, %c0_i32_0 : i32, i32
  }
  func.func @transform_2(%arg0: i32) -> (i32, i32) {
    %c0_i32 = arith.constant 0 : i32
    %c0_i32_0 = arith.constant 0 : i32
    %c0_i32_1 = arith.constant 0 : i32
    return %c0_i32, %c0_i32_0 : i32, i32
  }
  func.func @transform_3(%arg0: i32) -> (i32, i32) {
    %c0_i32 = arith.constant 0 : i32
    %c0_i32_0 = arith.constant 0 : i32
    %c0_i32_1 = arith.constant 0 : i32
    return %c0_i32, %c0_i32_0 : i32, i32
  }
  func.func @transform_4(%arg0: i32) -> (i32, i32) {
    %c0_i32 = arith.constant 0 : i32
    %c0_i32_0 = arith.constant 0 : i32
    %c0_i32_1 = arith.constant 0 : i32
    return %c0_i32, %c0_i32_0 : i32, i32
  }
  func.func @transform_5(%arg0: i32) -> (i32, i32) {
    %c0_i32 = arith.constant 0 : i32
    %c0_i32_0 = arith.constant 0 : i32
    return %arg0, %c0_i32 : i32, i32
  }
}

</mosaic_0001>

<llo_original>
// kernel: linear_qnet_forward.1
$region0: #{linear_qnet_forward.1}
  #allocation0 [shape = 'u32[]', space=smem, size = 0x4, offset = 0x4, fixed_abs, tag = 'smem constant byte address 0x4 - core index']
  #allocation1 [shape = 'u32[144,128]{1,0:T(1,128)}', space=vmem, size = 0x12000, scoped, tag = 'internal scratch']
  %s0 = inlined_call_operand.vmem [shape: f32[8,16], index: 0, kind: input, shape index: {}]
  %s1 = inlined_call_operand.vmem [shape: f32[16,128], index: 1, kind: input, shape index: {}]
  %s2 = inlined_call_operand.vmem [shape: f32[1,128], index: 2, kind: input, shape index: {}]
  %s3 = inlined_call_operand.vmem [shape: f32[128,128], index: 3, kind: input, shape index: {}]
  %s4 = inlined_call_operand.vmem [shape: f32[1,128], index: 4, kind: input, shape index: {}]
  %s5 = inlined_call_operand.hbm [shape: f32[8,128], index: 5, kind: output, shape index: {}]
  %s6 = sld [smem:[#allocation0]]
  $region30: #{linear_qnet_forward.1} parent=0
    _
  %s8 = ssub.s32 1, %s6
  %s9 = scalar_select 0, %s8, %s6
  $region1: #{linear_qnet_forward.1} parent=0
    #allocation2 [shape = 'u8[4096]{0}', space=vmem, size = 0x1000, scoped, tag = 'output window, operand 0, single buffered']
    #allocation3 [shape = 's32[1]{0}', space=sflag, size = 0x4, scoped, tag = 'scoped memory for linear_qnet_forward.1']
    %10 = vsyncpa [#allocation3], 0
    // Predicated region
    $region2: #{linear_qnet_forward.1} parent=1 // pred_check
      _
    $region3: #{linear_qnet_forward.1} parent=1 // pred_check_branch
      %12 = sbr.rel (0) target = $region5
    $region4: #{linear_qnet_forward.1} parent=1 // pred_region
      _
    $region5: #{linear_qnet_forward.1} parent=1 // pred_fallthru
      _
    // Predicated region
    $region6: #{linear_qnet_forward.1} parent=1 // pred_check
      _
    $region7: #{linear_qnet_forward.1} parent=1 // pred_check_branch
      %14 = sbr.rel (0) target = $region9
    $region8: #{linear_qnet_forward.1} parent=1 // pred_region
      _
    $region9: #{linear_qnet_forward.1} parent=1 // pred_fallthru
      _
    // Predicated region
    $region10: #{linear_qnet_forward.1} parent=1 // pred_check
      _
    $region11: #{linear_qnet_forward.1} parent=1 // pred_check_branch
      %16 = sbr.rel (0) target = $region13
    $region12: #{linear_qnet_forward.1} parent=1 // pred_region
      _
    $region13: #{linear_qnet_forward.1} parent=1 // pred_fallthru
      _
    // Predicated region
    $region14: #{linear_qnet_forward.1} parent=1 // pred_check
      _
    $region15: #{linear_qnet_forward.1} parent=1 // pred_check_branch
      %18 = sbr.rel (0) target = $region17
    $region16: #{linear_qnet_forward.1} parent=1 // pred_region
      _
    $region17: #{linear_qnet_forward.1} parent=1 // pred_fallthru
      _
    // Predicated region
    $region18: #{linear_qnet_forward.1} parent=1 // pred_check
      _
    $region19: #{linear_qnet_forward.1} parent=1 // pred_check_branch
      %20 = sbr.rel (0) target = $region21
    $region20: #{linear_qnet_forward.1} parent=1 // pred_region
      _
    $region21: #{linear_qnet_forward.1} parent=1 // pred_fallthru
      _
    %v21 = vld [vmem:[%s0] sm:$0xff]
    %v22 = vld [vmem:[%s1] sm:$0xff]
    %v23 = vld [vmem:[%s1 + $0x8] sm:$0xff]
    %v24 = vld [vmem:[%s2] sm:$0x1]
    %v26 = vlaneseq
    %v27 = vshrl.u32 %v26, 7
    %v28 = vsub.s32 0, %v27
    %v29 = vrot.slane %v24, %v28
    %vm31 = vcmask 130048
    %v33 = vsel %vm31, %v21, 0
    %35 = vmatprep.subr.mxu0 0.0
    %36 = vmatpush1.msra.mxu0 %v22
    %37 = vmatprep.subr.mxu0 0.0
    %38 = vmatpush1.msra.mxu0 %v23
    %39 = vmatprep.subr.mxu0 0.0
    %40 = vmatpush1.msra.mxu0 0.0
    %41 = vmatprep.subr.mxu0 0.0
    %42 = vmatpush1.msra.mxu0 0.0
    %43 = vmatprep.subr.mxu0 0.0
    %44 = vmatpush1.msra.mxu0 0.0
    %45 = vmatprep.subr.mxu0 0.0
    %46 = vmatpush1.msra.mxu0 0.0
    %47 = vmatprep.subr.mxu0 0.0
    %48 = vmatpush1.msra.mxu0 0.0
    %49 = vmatprep.subr.mxu0 0.0
    %50 = vmatpush1.msra.mxu0 0.0
    %51 = vmatprep.subr.mxu0 0.0
    %52 = vmatpush1.msra.mxu0 0.0
    %53 = vmatprep.subr.mxu0 0.0
    %54 = vmatpush1.msra.mxu0 0.0
    %55 = vmatprep.subr.mxu0 0.0
    %56 = vmatpush1.msra.mxu0 0.0
    %57 = vmatprep.subr.mxu0 0.0
    %58 = vmatpush1.msra.mxu0 0.0
    %59 = vmatprep.subr.mxu0 0.0
    %60 = vmatpush1.msra.mxu0 0.0
    %61 = vmatprep.subr.mxu0 0.0
    %62 = vmatpush1.msra.mxu0 0.0
    %63 = vmatprep.subr.mxu0 0.0
    %64 = vmatpush1.msra.mxu0 0.0
    %65 = vmatprep.subr.mxu0 0.0
    %66 = vmatpush1.msra.mxu0 0.0
    %67 = vmatprep.subr.mxu0 0.0
    %68 = vmatpush1.msra.mxu0 0.0
    %69 = vmatprep.subr.mxu0 0.0
    %70 = vmatpush1.msra.mxu0 0.0
    %71 = vmatprep.subr.mxu0 0.0
    %72 = vmatpush1.msra.mxu0 0.0
    %73 = vmatprep.subr.mxu0 0.0
    %74 = vmatpush1.msra.mxu0 0.0
    %75 = vmatprep.subr.mxu0 0.0
    %76 = vmatpush1.msra.mxu0 0.0
    %77 = vmatprep.subr.mxu0 0.0
    %78 = vmatpush1.msra.mxu0 0.0
    %79 = vmatprep.subr.mxu0 0.0
    %80 = vmatpush1.msra.mxu0 0.0
    %81 = vmatprep.subr.mxu0 0.0
    %82 = vmatpush1.msra.mxu0 0.0
    %83 = vmatprep.subr.mxu0 0.0
    %84 = vmatpush1.msra.mxu0 0.0
    %85 = vmatprep.subr.mxu0 0.0
    %86 = vmatpush1.msra.mxu0 0.0
    %87 = vmatprep.subr.mxu0 0.0
    %88 = vmatpush1.msra.mxu0 0.0
    %89 = vmatprep.subr.mxu0 0.0
    %90 = vmatpush1.msra.mxu0 0.0
    %91 = vmatprep.subr.mxu0 0.0
    %92 = vmatpush1.msra.mxu0 0.0
    %93 = vmatprep.subr.mxu0 0.0
    %94 = vmatpush1.msra.mxu0 0.0
    %95 = vmatprep.subr.mxu0 0.0
    %96 = vmatpush1.msra.mxu0 0.0
    %97 = vmatprep.subr.mxu0 0.0
    %98 = vmatpush1.msra.mxu0 0.0
    %99 = vmatprep.mubr.f32.mxu0 0.0
    %100 = vmatmul.mubr.f32.gmra.mrb[0].mxu0 %v33
    %v101 = vpop.f32.mrb[0].mxu0
    %v102 = vadd.f32 %v29, %v101
    %v103 = vpop.f32.mrb[0].mxu0
    %104 = vdwg.mxu0
    %v105 = vmax.f32 %v102, 0.0
    %v106 = vld [vmem:[%s3] sm:$0xff]
    %v107 = vld [vmem:[%s3 + $0x8] sm:$0xff]
    %v108 = vld [vmem:[%s3 + $0x10] sm:$0xff]
    %v109 = vld [vmem:[%s3 + $0x18] sm:$0xff]
    %v110 = vld [vmem:[%s3 + $0x20] sm:$0xff]
    %v111 = vld [vmem:[%s3 + $0x28] sm:$0xff]
    %v112 = vld [vmem:[%s3 + $0x30] sm:$0xff]
    %v113 = vld [vmem:[%s3 + $0x38] sm:$0xff]
    %v114 = vld [vmem:[%s3 + $0x40] sm:$0xff]
    %v115 = vld [vmem:[%s3 + $0x48] sm:$0xff]
    %v116 = vld [vmem:[%s3 + $0x50] sm:$0xff]
    %v117 = vld [vmem:[%s3 + $0x58] sm:$0xff]
    %v118 = vld [vmem:[%s3 + $0x60] sm:$0xff]
    %v119 = vld [vmem:[%s3 + $0x68] sm:$0xff]
    %v120 = vld [vmem:[%s3 + $0x70] sm:$0xff]
    %v121 = vld [vmem:[%s3 + $0x78] sm:$0xff]
    %v122 = vld [vmem:[%s4] sm:$0x1]
    %v124 = vlaneseq
    %v125 = vshrl.u32 %v124, 7
    %v126 = vsub.s32 0, %v125
    %v127 = vrot.slane %v122, %v126
    %129 = vmatprep.subr.mxu0 0.0
    %130 = vmatpush1.msra.mxu0 %v106
    %131 = vmatprep.subr.mxu0 0.0
    %132 = vmatpush1.msra.mxu0 %v107
    %133 = vmatprep.subr.mxu0 0.0
    %134 = vmatpush1.msra.mxu0 %v108
    %135 = vmatprep.subr.mxu0 0.0
    %136 = vmatpush1.msra.mxu0 %v109
    %137 = vmatprep.subr.mxu0 0.0
    %138 = vmatpush1.msra.mxu0 %v110
    %139 = vmatprep.subr.mxu0 0.0
    %140 = vmatpush1.msra.mxu0 %v111
    %141 = vmatprep.subr.mxu0 0.0
    %142 = vmatpush1.msra.mxu0 %v112
    %143 = vmatprep.subr.mxu0 0.0
    %144 = vmatpush1.msra.mxu0 %v113
    %145 = vmatprep.subr.mxu0 0.0
    %146 = vmatpush1.msra.mxu0 %v114
    %147 = vmatprep.subr.mxu0 0.0
    %148 = vmatpush1.msra.mxu0 %v115
    %149 = vmatprep.subr.mxu0 0.0
    %150 = vmatpush1.msra.mxu0 %v116
    %151 = vmatprep.subr.mxu0 0.0
    %152 = vmatpush1.msra.mxu0 %v117
    %153 = vmatprep.subr.mxu0 0.0
    %154 = vmatpush1.msra.mxu0 %v118
    %155 = vmatprep.subr.mxu0 0.0
    %156 = vmatpush1.msra.mxu0 %v119
    %157 = vmatprep.subr.mxu0 0.0
    %158 = vmatpush1.msra.mxu0 %v120
    %159 = vmatprep.subr.mxu0 0.0
    %160 = vmatpush1.msra.mxu0 %v121
    %161 = vmatprep.subr.mxu0 0.0
    %162 = vmatpush1.msra.mxu0 0.0
    %163 = vmatprep.subr.mxu0 0.0
    %164 = vmatpush1.msra.mxu0 0.0
    %165 = vmatprep.subr.mxu0 0.0
    %166 = vmatpush1.msra.mxu0 0.0
    %167 = vmatprep.subr.mxu0 0.0
    %168 = vmatpush1.msra.mxu0 0.0
    %169 = vmatprep.subr.mxu0 0.0
    %170 = vmatpush1.msra.mxu0 0.0
    %171 = vmatprep.subr.mxu0 0.0
    %172 = vmatpush1.msra.mxu0 0.0
    %173 = vmatprep.subr.mxu0 0.0
    %174 = vmatpush1.msra.mxu0 0.0
    %175 = vmatprep.subr.mxu0 0.0
    %176 = vmatpush1.msra.mxu0 0.0
    %177 = vmatprep.subr.mxu0 0.0
    %178 = vmatpush1.msra.mxu0 0.0
    %179 = vmatprep.subr.mxu0 0.0
    %180 = vmatpush1.msra.mxu0 0.0
    %181 = vmatprep.subr.mxu0 0.0
    %182 = vmatpush1.msra.mxu0 0.0
    %183 = vmatprep.subr.mxu0 0.0
    %184 = vmatpush1.msra.mxu0 0.0
    %185 = vmatprep.subr.mxu0 0.0
    %186 = vmatpush1.msra.mxu0 0.0
    %187 = vmatprep.subr.mxu0 0.0
    %188 = vmatpush1.msra.mxu0 0.0
    %189 = vmatprep.subr.mxu0 0.0
    %190 = vmatpush1.msra.mxu0 0.0
    %191 = vmatprep.subr.mxu0 0.0
    %192 = vmatpush1.msra.mxu0 0.0
    %193 = vmatprep.mubr.f32.mxu0 0.0
    %194 = vmatmul.mubr.f32.gmra.mrb[0].mxu0 %v105
    %v195 = vpop.f32.mrb[0].mxu0
    %v196 = vadd.f32 %v127, %v195
    %v197 = vpop.f32.mrb[0].mxu0
    %198 = vdwg.mxu0
    %199 = vst [vmem:[#allocation2] sm:$0xff] %v196
    // Predicated region
    $region22: #{linear_qnet_forward.1} parent=1 // pred_check
      _
    $region23: #{linear_qnet_forward.1} parent=1 // pred_check_branch
      %201 = sbr.rel (0) target = $region25
    $region24: #{linear_qnet_forward.1} parent=1 // pred_region
      %s203 = ssub.s32 128, 128
      %204 = vsyncadd [#allocation3], %s203
      %s206 = sshll.u32 [#allocation2], 4
      %s207 = int_to_ptr.vmem [resolvable:$true] %s206
      %209 = dma.vmem_to_hbm [thread:$0]  %s207, 128, %s5, [#allocation3]
    $region25: #{linear_qnet_forward.1} parent=1 // pred_fallthru
      _
    // Predicated region
    $region26: #{linear_qnet_forward.1} parent=1 // pred_check
      _
    $region27: #{linear_qnet_forward.1} parent=1 // pred_check_branch
      %211 = sbr.rel (0) target = $region29
    $region28: #{linear_qnet_forward.1} parent=1 // pred_region
      %212 = dma.done [#allocation3], 128
    $region29: #{linear_qnet_forward.1} parent=1 // pred_fallthru
      _
    %213 = vsyncpa [#allocation3], 1

</llo_original>
